<compile_context>
chip_gen: v5e
topology: v5e:2x2
jax: 0.10.0
libtpu: 0.0.40
codegen_flags: <defaults>
</compile_context>

<pallas_src>
import numpy as np
import jax
import jax.numpy as jnp
from jax.experimental import pallas as pl
from jax.experimental.pallas import tpu as pltpu


def _cdiv(a, b):
    return (a + b - 1) // b


def _round_up(x, d):
    return _cdiv(x, d) * d


def _pick_tm(M, cap=32768):
    """Lane-tile width.

    Per-column VMEM cost is only ~64 B (K=16 bf16 in + O=8 bf16 out), so even
    TM=32768 double-buffered is ~3 MiB — fits every generation incl. v7x's
    64 MiB VMEM.  Aim for ~4 grid steps (even, so v7x's 2 TensorCores balance
    on the 'parallel' M axis) once M is large enough.
    """
    tm = max(128, min(cap, _round_up(_cdiv(M, 4), 128)))
    steps = _cdiv(M, tm)
    if steps > 2 and steps % 2 == 1:
        # prefer an even step count for v7x 2-TC load balance
        tm = max(128, min(cap, _round_up(_cdiv(M, steps + 1), 128)))
    return tm


# ----------------------------- Pallas kernel ------------------------------- #
def _subgraph_conv_kernel(wh_ref, wc_ref, b_ref, xh_ref, xc_ref, o_ref):
    # wh_ref: (O, C)     bf16  hub weights   W[o, c, 0]
    # wc_ref: (O, m*C)   bf16  child weights W[o, c, k], k=1..m (k-major, c-minor)
    # b_ref : (O, 1)     f32   conv bias
    # xh_ref: (C,   TM)  bf16  hub features,   M on the lane axis
    # xc_ref: (m*C, TM)  bf16  child features, M on the lane axis
    # o_ref : (O, TM)    bf16  tanh(W @ X^T + b)  -- lane-dense stores
    #
    # f32 accumulate on the MXU; bias-add + tanh stay f32 (v5e has no bf16
    # VPU/EUP path); only the final store narrows to bf16.
    y = jnp.dot(wh_ref[...], xh_ref[...], preferred_element_type=jnp.float32)
    y = y + jnp.dot(wc_ref[...], xc_ref[...], preferred_element_type=jnp.float32)
    o_ref[...] = jnp.tanh(y + b_ref[...]).astype(o_ref.dtype)


def _pallas_wxt_bias_tanh(w_hub, w_ch, bias, xh_t, xc_t, *, tm):
    O, C = w_hub.shape
    mC = w_ch.shape[1]
    M = xh_t.shape[1]
    grid = (_cdiv(M, tm),)   # ragged last block handled by Pallas clipping (no pad)
    return pl.pallas_call(
        _subgraph_conv_kernel,
        out_shape=jax.ShapeDtypeStruct((O, M), jnp.bfloat16),
        grid_spec=pltpu.PrefetchScalarGridSpec(
            num_scalar_prefetch=0,
            grid=grid,
            in_specs=[
                pl.BlockSpec((O, C), lambda i: (0, 0)),    # hub weight: resident (tiny)
                pl.BlockSpec((O, mC), lambda i: (0, 0)),   # child weight: resident
                pl.BlockSpec((O, 1), lambda i: (0, 0)),    # bias: resident
                pl.BlockSpec((C, tm), lambda i: (0, i)),   # hub features, lane-dense
                pl.BlockSpec((mC, tm), lambda i: (0, i)),  # child features, lane-dense
            ],
            out_specs=pl.BlockSpec((O, tm), lambda i: (0, i)),
        ),
        compiler_params=pltpu.CompilerParams(
            dimension_semantics=("parallel",),             # v7x: shard M over 2 TCs
            vmem_limit_bytes=32 * 1024 * 1024,             # safe for v7x's 64 MiB VMEM
        ),
        cost_estimate=pl.CostEstimate(
            flops=2 * O * (C + mC) * M,
            transcendentals=O * M,
            bytes_accessed=((C + mC) * M + O * (C + mC) + O * M) * 2 + O * 4,
        ),
    )(w_hub, w_ch, bias.reshape(O, 1), xh_t, xc_t)


# ----------------------------- glue / wrapper ------------------------------ #
def generate_graph(m, num_nodes):
    """Replicates SubGraphConv.generate_graph: int array (m+1, G)."""
    now = 0
    cols = []
    while now * m + 1 < num_nodes:
        cols.append([now] + list(range(now * m + 1, now * m + 1 + m)))
        now += 1
    return np.stack(cols, axis=-1).astype(np.int32)


def subgraph_conv_forward(h, weight, bias, m):
    """
    h:      (B, N, C) float32     weight: (O, C, m+1, 1)     bias: (O,)
    Returns the PyTorch-equivalent output:
        (B, G, O)                when the squeezed conv output is 3-D (usual case)
        unsqueeze(1) of squeeze  otherwise (degenerate B/O/G == 1 shapes).
    """
    B, N, C = h.shape
    O = weight.shape[0]

    G = _cdiv(N - 1, m)                   # columns generate_graph produces
    if G < 1 or (N - 1) % m != 0:
        # PyTorch's generated graph would index h out of range here (runtime error).
        raise ValueError(
            f"SubGraphConv requires (num_nodes-1) divisible by m and >= m; "
            f"got num_nodes={N}, m={m}")
    M = B * G

    # ---- sub-graph gather replaced by static slices; bf16 cast BEFORE the ----
    # ---- layout transposes; hub/child slabs stay separate (no K-axis concat) --
    # X^T_hub[c, b*G+g]           = h[b, g, c]
    # X^T_ch [(k-1)*C+c, b*G+g]   = h[b, g*m+k, c],  k = 1..m
    hubs_t = jnp.transpose(h[:, :G, :].astype(jnp.bfloat16), (2, 0, 1)).reshape(C, M)
    children = h[:, 1:1 + G * m, :].astype(jnp.bfloat16).reshape(B, G, m, C)
    children_t = jnp.transpose(children, (2, 3, 0, 1)).reshape(m * C, M)

    # matching weight split: w_hub[o,c] = W[o,c,0];  w_ch[o,(k-1)*C+c] = W[o,c,k]
    w_hub = weight[:, :, 0, 0].astype(jnp.bfloat16)                             # (O, C)
    w_ch = jnp.transpose(weight[:, :, 1:, 0], (0, 2, 1)).reshape(O, m * C)
    w_ch = w_ch.astype(jnp.bfloat16)                                            # (O, m*C)

    out_t = _pallas_wxt_bias_tanh(
        w_hub, w_ch, bias.astype(jnp.float32), hubs_t, children_t,
        tm=_pick_tm(M),
    )                                                           # (O, B*G) bf16

    # ---- PyTorch squeeze()/permute/unsqueeze epilogue, as ONE relayout ------
    squeezed = tuple(d for d in (B, O, 1, G) if d != 1)         # torch .squeeze()
    if len(squeezed) == 3:       # common case: B, O, G all > 1  ->  (B, G, O)
        return jnp.transpose(out_t.reshape(O, B, G), (1, 2, 0)).astype(jnp.float32)
    # degenerate shapes: reproduce squeeze() then .unsqueeze(1)
    out_bog = jnp.transpose(out_t.reshape(O, B, G), (1, 0, 2)).astype(jnp.float32)
    return jnp.expand_dims(out_bog.reshape(squeezed), 1)


# --------------------------------- main ------------------------------------ #
if __name__ == "__main__":
    key = jax.random.PRNGKey(0)
    k_h, k_w, k_b = jax.random.split(key, 3)

    # small shapes consistent with the module
    B, N, C = 2, 16, 4          # h: (batch, nodes, in_channel)
    m = 3                       # opt.m ; (N - 1) % m == 0 -> valid sub-graphs
    O = 8                       # out_channel

    h = jax.random.normal(k_h, (B, N, C), dtype=jnp.float32)

    # xavier_normal_ for conv weight (O, C, m+1, 1)
    fan_in, fan_out = C * (m + 1), O * (m + 1)
    std = float(np.sqrt(2.0 / (fan_in + fan_out)))
    weight = std * jax.random.normal(k_w, (O, C, m + 1, 1), dtype=jnp.float32)

    # PyTorch Conv2d default bias init: U(-1/sqrt(fan_in), 1/sqrt(fan_in))
    bound = 1.0 / np.sqrt(fan_in)
    bias = jax.random.uniform(k_b, (O,), minval=-bound, maxval=bound,
                              dtype=jnp.float32)

    out = subgraph_conv_forward(h, weight, bias, m)
    jax.block_until_ready(out)

    G = (N - 1) // m
    assert out.shape == (B, G, O), out.shape

    # correctness check against the PyTorch math (gather formulation);
    # loose tolerance because the kernel uses bf16 operands and a bf16 store
    graph = generate_graph(m, N)                       # (m+1, G)
    sub_ref = h[:, graph, :]                           # (B, m+1, G, C)
    ref = jnp.tanh(jnp.einsum("bkgc,ock->bgo", sub_ref, weight[..., 0]) + bias)
    np.testing.assert_allclose(np.asarray(out), np.asarray(ref), rtol=3e-2, atol=3e-2)

    print("KERNEL_OK")
</pallas_src>

<mosaic_0001>
module attributes {stable_mosaic.version = 11 : i64} {
  func.func @_subgraph_conv_kernel(%arg0: i32, %arg1: memref<8x4xbf16, #tpu.memory_space<vmem>>, %arg2: memref<8x12xbf16, #tpu.memory_space<vmem>>, %arg3: memref<8x1xf32, #tpu.memory_space<vmem>>, %arg4: memref<4x128xbf16, #tpu.memory_space<vmem>>, %arg5: memref<12x128xbf16, #tpu.memory_space<vmem>>, %arg6: memref<8x128xbf16, #tpu.memory_space<vmem>>) attributes {dimension_semantics = [#tpu.dimension_semantics<parallel>], iteration_bounds = array<i64: 1>, scalar_prefetch = 0 : i64, scratch_operands = 0 : i64, tpu.core_type = #tpu.core_type<tc>, window_params = [{pipeline_mode = #tpu.pipeline_mode<synchronous>, transform_indices = @transform_0, window_bounds = array<i64: 8, 4>}, {pipeline_mode = #tpu.pipeline_mode<synchronous>, transform_indices = @transform_1, window_bounds = array<i64: 8, 12>}, {pipeline_mode = #tpu.pipeline_mode<synchronous>, transform_indices = @transform_2, window_bounds = array<i64: 8, 1>}, {transform_indices = @transform_3, window_bounds = array<i64: 4, 128>}, {transform_indices = @transform_4, window_bounds = array<i64: 12, 128>}, {transform_indices = @transform_5, window_bounds = array<i64: 8, 128>}]} {
    %c0 = arith.constant 0 : index
    %c0_0 = arith.constant 0 : index
    %0 = vector.load %arg1[%c0, %c0_0] : memref<8x4xbf16, #tpu.memory_space<vmem>>, vector<8x4xbf16>
    %c0_1 = arith.constant 0 : index
    %c0_2 = arith.constant 0 : index
    %1 = vector.load %arg4[%c0_1, %c0_2] : memref<4x128xbf16, #tpu.memory_space<vmem>>, vector<4x128xbf16>
    %cst = arith.constant dense<0.000000e+00> : vector<8x128xf32>
    %2 = tpu.matmul %0, %1, %cst {dimension_numbers = #tpu.dot_dimension_numbers<[1], [0], [0], [1], [0, 0, 1, 1], [], []>} : vector<8x4xbf16>, vector<4x128xbf16>, vector<8x128xf32> -> vector<8x128xf32>
    %c0_3 = arith.constant 0 : index
    %c0_4 = arith.constant 0 : index
    %3 = vector.load %arg2[%c0_3, %c0_4] : memref<8x12xbf16, #tpu.memory_space<vmem>>, vector<8x12xbf16>
    %c0_5 = arith.constant 0 : index
    %c0_6 = arith.constant 0 : index
    %4 = vector.load %arg5[%c0_5, %c0_6] : memref<12x128xbf16, #tpu.memory_space<vmem>>, vector<12x128xbf16>
    %cst_7 = arith.constant dense<0.000000e+00> : vector<8x128xf32>
    %5 = tpu.matmul %3, %4, %cst_7 {dimension_numbers = #tpu.dot_dimension_numbers<[1], [0], [0], [1], [0, 0, 1, 1], [], []>} : vector<8x12xbf16>, vector<12x128xbf16>, vector<8x128xf32> -> vector<8x128xf32>
    %6 = arith.addf %2, %5 : vector<8x128xf32>
    %c0_8 = arith.constant 0 : index
    %c0_9 = arith.constant 0 : index
    %7 = vector.load %arg3[%c0_8, %c0_9] : memref<8x1xf32, #tpu.memory_space<vmem>>, vector<8x1xf32>
    %8 = vector.broadcast %7 : vector<8x1xf32> to vector<8x128xf32>
    %9 = arith.addf %6, %8 : vector<8x128xf32>
    %10 = math.tanh %9 : vector<8x128xf32>
    %11 = arith.truncf %10 : vector<8x128xf32> to vector<8x128xbf16>
    %c0_10 = arith.constant 0 : index
    %c0_11 = arith.constant 0 : index
    %12 = vector.load %arg6[%c0_10, %c0_11] : memref<8x128xbf16, #tpu.memory_space<vmem>>, vector<8x128xbf16>
    tpu.vector_store %arg6[%c0_10, %c0_11], %11 {strides = array<i32>} : memref<8x128xbf16, #tpu.memory_space<vmem>>, vector<8x128xbf16>,
    return
  }
  func.func @transform_0(%arg0: i32) -> (i32, i32) {
    %c0_i32 = arith.constant 0 : i32
    %c0_i32_0 = arith.constant 0 : i32
    %c0_i32_1 = arith.constant 0 : i32
    return %c0_i32, %c0_i32_0 : i32, i32
  }
  func.func @transform_1(%arg0: i32) -> (i32, i32) {
    %c0_i32 = arith.constant 0 : i32
    %c0_i32_0 = arith.constant 0 : i32
    %c0_i32_1 = arith.constant 0 : i32
    return %c0_i32, %c0_i32_0 : i32, i32
  }
  func.func @transform_2(%arg0: i32) -> (i32, i32) {
    %c0_i32 = arith.constant 0 : i32
    %c0_i32_0 = arith.constant 0 : i32
    %c0_i32_1 = arith.constant 0 : i32
    return %c0_i32, %c0_i32_0 : i32, i32
  }
  func.func @transform_3(%arg0: i32) -> (i32, i32) {
    %c0_i32 = arith.constant 0 : i32
    %c0_i32_0 = arith.constant 0 : i32
    return %c0_i32, %arg0 : i32, i32
  }
  func.func @transform_4(%arg0: i32) -> (i32, i32) {
    %c0_i32 = arith.constant 0 : i32
    %c0_i32_0 = arith.constant 0 : i32
    return %c0_i32, %arg0 : i32, i32
  }
  func.func @transform_5(%arg0: i32) -> (i32, i32) {
    %c0_i32 = arith.constant 0 : i32
    %c0_i32_0 = arith.constant 0 : i32
    return %c0_i32, %arg0 : i32, i32
  }
}

</mosaic_0001>

<llo_original>
// kernel: tpu_custom_call.1
$region0: #{tpu_custom_call.1}
  #allocation0 [shape = 'u32[]', space=smem, size = 0x4, offset = 0x4, fixed_abs, tag = 'smem constant byte address 0x4 - core index']
  #allocation1 [shape = 'u32[72,128]{1,0:T(1,128)}', space=vmem, size = 0x9000, scoped, tag = 'internal scratch']
  %s0 = inlined_call_operand.vmem [shape: bf16[8,4], index: 0, kind: input, shape index: {}]
  %s1 = inlined_call_operand.vmem [shape: bf16[8,12], index: 1, kind: input, shape index: {}]
  %s2 = inlined_call_operand.vmem [shape: f32[8,1], index: 2, kind: input, shape index: {}]
  %s3 = inlined_call_operand.vmem [shape: bf16[4,10], index: 3, kind: input, shape index: {}]
  %s4 = inlined_call_operand.vmem [shape: bf16[12,10], index: 4, kind: input, shape index: {}]
  %s5 = inlined_call_operand.hbm [shape: bf16[8,10], index: 5, kind: output, shape index: {}]
  %s6 = sld [smem:[#allocation0]]
  $region30: #{tpu_custom_call.1} parent=0
    _
  %s8 = ssub.s32 1, %s6
  %s9 = scalar_select 0, %s8, %s6
  $region1: #{tpu_custom_call.1} parent=0
    #allocation2 [shape = 'u8[2048]{0}', space=vmem, size = 0x800, scoped, tag = 'output window, operand 0, single buffered']
    #allocation3 [shape = 's32[1]{0}', space=sflag, size = 0x4, scoped, tag = 'scoped memory for tpu_custom_call.1']
    %10 = vsyncpa [#allocation3], 0
    // Predicated region
    $region2: #{tpu_custom_call.1} parent=1 // pred_check
      _
    $region3: #{tpu_custom_call.1} parent=1 // pred_check_branch
      %12 = sbr.rel (0) target = $region5
    $region4: #{tpu_custom_call.1} parent=1 // pred_region
      _
    $region5: #{tpu_custom_call.1} parent=1 // pred_fallthru
      _
    // Predicated region
    $region6: #{tpu_custom_call.1} parent=1 // pred_check
      _
    $region7: #{tpu_custom_call.1} parent=1 // pred_check_branch
      %14 = sbr.rel (0) target = $region9
    $region8: #{tpu_custom_call.1} parent=1 // pred_region
      _
    $region9: #{tpu_custom_call.1} parent=1 // pred_fallthru
      _
    // Predicated region
    $region10: #{tpu_custom_call.1} parent=1 // pred_check
      _
    $region11: #{tpu_custom_call.1} parent=1 // pred_check_branch
      %16 = sbr.rel (0) target = $region13
    $region12: #{tpu_custom_call.1} parent=1 // pred_region
      _
    $region13: #{tpu_custom_call.1} parent=1 // pred_fallthru
      _
    // Predicated region
    $region14: #{tpu_custom_call.1} parent=1 // pred_check
      _
    $region15: #{tpu_custom_call.1} parent=1 // pred_check_branch
      %18 = sbr.rel (0) target = $region17
    $region16: #{tpu_custom_call.1} parent=1 // pred_region
      _
    $region17: #{tpu_custom_call.1} parent=1 // pred_fallthru
      _
    // Predicated region
    $region18: #{tpu_custom_call.1} parent=1 // pred_check
      _
    $region19: #{tpu_custom_call.1} parent=1 // pred_check_branch
      %20 = sbr.rel (0) target = $region21
    $region20: #{tpu_custom_call.1} parent=1 // pred_region
      _
    $region21: #{tpu_custom_call.1} parent=1 // pred_fallthru
      _
    %v22 = vld [vmem:[%s0] sm:$0xf]
    %v23 = vld [vmem:[%s3] sm:$0x3]
    %v24 = vld [vmem:[%s1] sm:$0xf]
    %v25 = vld [vmem:[%s4] sm:$0xf]
    %v26 = vld [vmem:[%s4 + $0x4] sm:$0x3]
    %v29 = vunpack.c.l.b16 %v25
    %v30 = vunpack.c.l.b16 %v26
    %v31 = vpack.c.b16 %v30, %v29
    %vm32 = vcmask 97280
    %v34 = vsel %vm32, %v24, 0
    %vm36 = vcmask 1045504
    %v38 = vsel %vm36, %v31, 0
    %40 = vmatpush.bf16.msra.mxu0 0
    %41 = vmatpush.bf16.msra.mxu0 0
    %42 = vmatpush.bf16.msra.mxu0 0
    %43 = vmatpush.bf16.msra.mxu0 0
    %44 = vmatpush.bf16.msra.mxu0 0
    %45 = vmatpush.bf16.msra.mxu0 0
    %46 = vmatpush.bf16.msra.mxu0 0
    %47 = vmatpush.bf16.msra.mxu0 %v38
    %48 = vmatmul.bf16.gmra.mxu0 %v34
    %v49 = vpop.f32.mrf.mxu0
    %v50 = vadd.f32 0.0, %v49
    %v51 = vpop.f32.mrf.mxu0
    %52 = vdwg.mxu0
    %vm53 = vcmask 31744
    %v55 = vsel %vm53, %v22, 0
    %vm57 = vcmask 1041408
    %v59 = vsel %vm57, %v23, 0
    %61 = vmatpush.bf16.msra.mxu0 0
    %62 = vmatpush.bf16.msra.mxu0 0
    %63 = vmatpush.bf16.msra.mxu0 0
    %64 = vmatpush.bf16.msra.mxu0 0
    %65 = vmatpush.bf16.msra.mxu0 0
    %66 = vmatpush.bf16.msra.mxu0 0
    %67 = vmatpush.bf16.msra.mxu0 0
    %68 = vmatpush.bf16.msra.mxu0 %v59
    %69 = vmatmul.bf16.gmra.mxu0 %v55
    %v70 = vpop.f32.mrf.mxu0
    %v71 = vadd.f32 %v50, %v70
    %v72 = vpop.f32.mrf.mxu0
    %73 = vdwg.mxu0
    %v74 = vld [vmem:[%s2] sm:$0xff]
    %76 = vset.pattern.permute.xlu0 0
    %77 = vperm.xlu0 %76, %v74
    %v78 = vpop.permute.xlu0 %77
    %v80 = vadd.f32 %v71, %v78
    %v81 = vtanh.pop %v80
    %v82 = vpack.c.bf16 %v81, %v81
    %83 = vst [vmem:[#allocation2] sm:$0xf] %v82
    // Predicated region
    $region22: #{tpu_custom_call.1} parent=1 // pred_check
      _
    $region23: #{tpu_custom_call.1} parent=1 // pred_check_branch
      %85 = sbr.rel (0) target = $region25
    $region24: #{tpu_custom_call.1} parent=1 // pred_region
      %87 = vsyncadd [#allocation3], 0
      %s89 = sshll.u32 [#allocation2], 4
      %s90 = int_to_ptr.vmem [resolvable:$true] %s89
      %s91 = sshll.u32 %s5, 4
      %s92 = int_to_ptr.hbm [resolvable:$true] %s91
      %94 = dma.vmem_to_hbm [thread:$0]  %s90, 64, %s92, [#allocation3]
    $region25: #{tpu_custom_call.1} parent=1 // pred_fallthru
      _
    // Predicated region
    $region26: #{tpu_custom_call.1} parent=1 // pred_check
      _
    $region27: #{tpu_custom_call.1} parent=1 // pred_check_branch
      %96 = sbr.rel (0) target = $region29
    $region28: #{tpu_custom_call.1} parent=1 // pred_region
      %98 = dma.done [#allocation3], 64
    $region29: #{tpu_custom_call.1} parent=1 // pred_fallthru
      _
    %99 = vsyncpa [#allocation3], 1

</llo_original>
